<compile_context>
chip_gen: v6e
topology: v6e:2x2x1
jax: 0.10.0
libtpu: 0.0.40
codegen_flags: <defaults>
</compile_context>

<pallas_src>
import jax
import jax.numpy as jnp
from jax.experimental import pallas as pl
from jax.experimental.pallas import tpu as pltpu


def _grn_reduce_kernel(x_ref, ssq_ref):
    """Accumulate per-(w,c) sum-of-squares over the H (sublane) axis."""
    @pl.when(pl.program_id(1) == 0)
    def _():
        ssq_ref[...] = jnp.zeros_like(ssq_ref)

    x = x_ref[...].astype(jnp.float32)                     # (h_tile, W*C)
    ssq_ref[...] += jnp.sum(x * x, axis=0, keepdims=True)  # (1, W*C) f32


def _grn_apply_kernel(x_ref, scale_ref, bias_ref, o_ref):
    """out = x * scale + bias, scale = gamma*Nx + 1 (per batch), bias = beta."""
    o_ref[...] = (x_ref[...] * scale_ref[...] + bias_ref[...]).astype(o_ref.dtype)


def _pick_h_tile(H, row_bytes, target_bytes=2 * 1024 * 1024):
    """Largest H-chunk that (a) satisfies the sublane-tiling constraint
    (multiple of 8 or full H) and (b) keeps one block under ~target_bytes."""
    if H % 8 != 0:
        return H  # full-extent block is always legal
    candidates = [d for d in range(8, H + 1, 8) if H % d == 0]
    best = candidates[0]
    for d in candidates:
        if d * row_bytes <= target_bytes:
            best = d
    return best


@jax.jit
def grn_forward(x, gamma, beta):
    """x: (N, H, W, C); gamma, beta: (C,). Returns (N, H, W, C)."""
    N, H, W, C = x.shape
    WC = W * C
    itemsize = jnp.dtype(x.dtype).itemsize
    xv = x.reshape(N, H, WC)                      # free view, lane dim = W*C

    h_tile = _pick_h_tile(H, WC * itemsize)
    n_h = H // h_tile

    # ---------------- Pass 1: sum-of-squares over H (and later W) -----------
    ssq = pl.pallas_call(
        _grn_reduce_kernel,
        out_shape=jax.ShapeDtypeStruct((N, 1, WC), jnp.float32),
        grid_spec=pltpu.PrefetchScalarGridSpec(
            num_scalar_prefetch=0,
            grid=(N, n_h),
            in_specs=[
                pl.BlockSpec((None, h_tile, WC), lambda n, h: (n, h, 0)),
            ],
            out_specs=pl.BlockSpec((None, 1, WC), lambda n, h: (n, 0, 0)),
        ),
        compiler_params=pltpu.CompilerParams(
            dimension_semantics=("parallel", "arbitrary"),
            vmem_limit_bytes=32 * 1024 * 1024,
        ),
        cost_estimate=pl.CostEstimate(
            flops=2 * N * H * WC,
            transcendentals=0,
            bytes_accessed=N * H * WC * itemsize + N * WC * 4,
        ),
    )(xv)

    # ---------------- Tiny (N, C) math in plain JAX --------------------------
    ssq_c = ssq.reshape(N, W, C).sum(axis=1)                     # (N, C) f32
    gx = jnp.sqrt(ssq_c)                                         # ||x||_2 over (H,W)
    nx = gx / (jnp.mean(gx, axis=-1, keepdims=True) + 1e-6)      # (N, C)
    scale = gamma.reshape(1, C).astype(jnp.float32) * nx + 1.0   # gamma*Nx + 1
    # Replicate per-channel rows across W so they broadcast over the W*C lane dim.
    scale_row = jnp.tile(scale[:, None, :], (1, W, 1)).reshape(N, 1, WC).astype(x.dtype)
    bias_row = jnp.tile(beta.reshape(1, 1, C).astype(jnp.float32), (1, W, 1))
    bias_row = bias_row.reshape(1, 1, WC).astype(x.dtype)

    # ---------------- Pass 2: elementwise apply ------------------------------
    out = pl.pallas_call(
        _grn_apply_kernel,
        out_shape=jax.ShapeDtypeStruct((N, H, WC), x.dtype),
        grid_spec=pltpu.PrefetchScalarGridSpec(
            num_scalar_prefetch=0,
            grid=(N, n_h),
            in_specs=[
                pl.BlockSpec((None, h_tile, WC), lambda n, h: (n, h, 0)),
                pl.BlockSpec((None, 1, WC), lambda n, h: (n, 0, 0)),
                pl.BlockSpec((None, 1, WC), lambda n, h: (0, 0, 0)),
            ],
            out_specs=pl.BlockSpec((None, h_tile, WC), lambda n, h: (n, h, 0)),
        ),
        compiler_params=pltpu.CompilerParams(
            dimension_semantics=("parallel", "parallel"),
            vmem_limit_bytes=32 * 1024 * 1024,
        ),
        cost_estimate=pl.CostEstimate(
            flops=2 * N * H * WC,
            transcendentals=0,
            bytes_accessed=2 * N * H * WC * itemsize,
        ),
    )(xv, scale_row, bias_row)

    return out.reshape(N, H, W, C)


def grn_reference(x, gamma, beta):
    """Pure-JAX reference mirroring the PyTorch forward."""
    gx = jnp.sqrt(jnp.sum(x * x, axis=(1, 2), keepdims=True))       # (N,1,1,C)
    nx = gx / (jnp.mean(gx, axis=-1, keepdims=True) + 1e-6)         # (N,1,1,C)
    g = gamma.reshape(1, 1, 1, -1)
    b = beta.reshape(1, 1, 1, -1)
    return g * (x * nx) + b + x


if __name__ == "__main__":
    key = jax.random.PRNGKey(0)
    kx, kg, kb = jax.random.split(key, 3)

    N, H, W, C = 2, 16, 16, 32
    x = jax.random.normal(kx, (N, H, W, C), dtype=jnp.float32)
    # Module __init__ uses zeros; use small deterministic random values so the
    # gamma/beta path is actually exercised.
    gamma = 0.1 * jax.random.normal(kg, (C,), dtype=jnp.float32)
    beta = 0.1 * jax.random.normal(kb, (C,), dtype=jnp.float32)

    out = grn_forward(x, gamma, beta)
    out = jax.block_until_ready(out)

    ref = grn_reference(x, gamma, beta)
    assert out.shape == (N, H, W, C)
    assert jnp.allclose(out, ref, atol=1e-5, rtol=1e-5), "mismatch vs reference"

    print("KERNEL_OK")
</pallas_src>

<mosaic_0001>
module attributes {stable_mosaic.version = 11 : i64} {
  func.func @_grn_reduce_kernel(%arg0: i32, %arg1: i32, %arg2: memref<1x16x512xf32, #tpu.memory_space<vmem>>, %arg3: memref<1x1x512xf32, #tpu.memory_space<vmem>>) attributes {dimension_semantics = [#tpu.dimension_semantics<parallel>, #tpu.dimension_semantics<arbitrary>], iteration_bounds = array<i64: 2, 1>, scalar_prefetch = 0 : i64, scratch_operands = 0 : i64, tpu.core_type = #tpu.core_type<tc>, window_params = [{transform_indices = @transform_0, window_bounds = array<i64: 1, 16, 512>}, {transform_indices = @transform_1, window_bounds = array<i64: 1, 1, 512>}]} {
    %c0_i32 = arith.constant 0 : i32
    %0 = arith.cmpi eq, %arg1, %c0_i32 : i32
    %1 = arith.extui %0 : i1 to i32
    %c0_i32_0 = arith.constant 0 : i32
    %2 = arith.cmpi ne, %1, %c0_i32_0 : i32
    scf.if %2 {
      %cst_9 = arith.constant 0.000000e+00 : f32
      %14 = vector.broadcast %cst_9 : f32 to vector<1x512xf32>
      %c0_10 = arith.constant 0 : index
      %c0_11 = arith.constant 0 : index
      %c0_12 = arith.constant 0 : index
      %15 = vector.load %arg3[%c0_10, %c0_11, %c0_12] : memref<1x1x512xf32, #tpu.memory_space<vmem>>, vector<1x1x512xf32>
      %16 = vector.shape_cast %15 : vector<1x1x512xf32> to vector<1x512xf32>
      %17 = vector.shape_cast %14 : vector<1x512xf32> to vector<1x1x512xf32>
      tpu.vector_store %arg3[%c0_10, %c0_11, %c0_12], %17 {strides = array<i32>} : memref<1x1x512xf32, #tpu.memory_space<vmem>>, vector<1x1x512xf32>,
    } else {
    }
    %c0 = arith.constant 0 : index
    %c0_1 = arith.constant 0 : index
    %c0_2 = arith.constant 0 : index
    %3 = vector.load %arg2[%c0, %c0_1, %c0_2] : memref<1x16x512xf32, #tpu.memory_space<vmem>>, vector<1x16x512xf32>
    %4 = vector.shape_cast %3 : vector<1x16x512xf32> to vector<16x512xf32>
    %c0_3 = arith.constant 0 : index
    %c0_4 = arith.constant 0 : index
    %c0_5 = arith.constant 0 : index
    %5 = vector.load %arg3[%c0_3, %c0_4, %c0_5] : memref<1x1x512xf32, #tpu.memory_space<vmem>>, vector<1x1x512xf32>
    %6 = vector.shape_cast %5 : vector<1x1x512xf32> to vector<1x512xf32>
    %7 = arith.mulf %4, %4 : vector<16x512xf32>
    %cst = arith.constant dense<0.000000e+00> : vector<512xf32>
    %8 = vector.multi_reduction <add>, %7, %cst [0] : vector<16x512xf32> to vector<512xf32>
    %9 = vector.shape_cast %8 : vector<512xf32> to vector<1x512xf32>
    %10 = arith.addf %6, %9 : vector<1x512xf32>
    %c0_6 = arith.constant 0 : index
    %c0_7 = arith.constant 0 : index
    %c0_8 = arith.constant 0 : index
    %11 = vector.load %arg3[%c0_6, %c0_7, %c0_8] : memref<1x1x512xf32, #tpu.memory_space<vmem>>, vector<1x1x512xf32>
    %12 = vector.shape_cast %11 : vector<1x1x512xf32> to vector<1x512xf32>
    %13 = vector.shape_cast %10 : vector<1x512xf32> to vector<1x1x512xf32>
    tpu.vector_store %arg3[%c0_6, %c0_7, %c0_8], %13 {strides = array<i32>} : memref<1x1x512xf32, #tpu.memory_space<vmem>>, vector<1x1x512xf32>,
    return
  }
  func.func @transform_0(%arg0: i32, %arg1: i32) -> (i32, i32, i32) {
    %c0_i32 = arith.constant 0 : i32
    %c0_i32_0 = arith.constant 0 : i32
    return %arg0, %arg1, %c0_i32 : i32, i32, i32
  }
  func.func @transform_1(%arg0: i32, %arg1: i32) -> (i32, i32, i32) {
    %c0_i32 = arith.constant 0 : i32
    %c0_i32_0 = arith.constant 0 : i32
    %c0_i32_1 = arith.constant 0 : i32
    return %arg0, %c0_i32, %c0_i32_0 : i32, i32, i32
  }
}

module attributes {stable_mosaic.version = 11 : i64} {
  func.func @_grn_apply_kernel(%arg0: i32, %arg1: i32, %arg2: memref<1x16x512xf32, #tpu.memory_space<vmem>>, %arg3: memref<1x1x512xf32, #tpu.memory_space<vmem>>, %arg4: memref<1x1x512xf32, #tpu.memory_space<vmem>>, %arg5: memref<1x16x512xf32, #tpu.memory_space<vmem>>) attributes {dimension_semantics = [#tpu.dimension_semantics<parallel>, #tpu.dimension_semantics<parallel>], iteration_bounds = array<i64: 2, 1>, scalar_prefetch = 0 : i64, scratch_operands = 0 : i64, tpu.core_type = #tpu.core_type<tc>, window_params = [{transform_indices = @transform_0, window_bounds = array<i64: 1, 16, 512>}, {transform_indices = @transform_1, window_bounds = array<i64: 1, 1, 512>}, {pipeline_mode = #tpu.pipeline_mode<synchronous>, transform_indices = @transform_2, window_bounds = array<i64: 1, 1, 512>}, {transform_indices = @transform_3, window_bounds = array<i64: 1, 16, 512>}]} {
    %c0 = arith.constant 0 : index
    %c0_0 = arith.constant 0 : index
    %c0_1 = arith.constant 0 : index
    %0 = vector.load %arg2[%c0, %c0_0, %c0_1] : memref<1x16x512xf32, #tpu.memory_space<vmem>>, vector<1x16x512xf32>
    %1 = vector.shape_cast %0 : vector<1x16x512xf32> to vector<16x512xf32>
    %c0_2 = arith.constant 0 : index
    %c0_3 = arith.constant 0 : index
    %c0_4 = arith.constant 0 : index
    %2 = vector.load %arg3[%c0_2, %c0_3, %c0_4] : memref<1x1x512xf32, #tpu.memory_space<vmem>>, vector<1x1x512xf32>
    %3 = vector.shape_cast %2 : vector<1x1x512xf32> to vector<1x512xf32>
    %4 = vector.broadcast %3 : vector<1x512xf32> to vector<16x512xf32>
    %5 = arith.mulf %1, %4 : vector<16x512xf32>
    %c0_5 = arith.constant 0 : index
    %c0_6 = arith.constant 0 : index
    %c0_7 = arith.constant 0 : index
    %6 = vector.load %arg4[%c0_5, %c0_6, %c0_7] : memref<1x1x512xf32, #tpu.memory_space<vmem>>, vector<1x1x512xf32>
    %7 = vector.shape_cast %6 : vector<1x1x512xf32> to vector<1x512xf32>
    %8 = vector.broadcast %7 : vector<1x512xf32> to vector<16x512xf32>
    %9 = arith.addf %5, %8 : vector<16x512xf32>
    %c0_8 = arith.constant 0 : index
    %c0_9 = arith.constant 0 : index
    %c0_10 = arith.constant 0 : index
    %10 = vector.load %arg5[%c0_8, %c0_9, %c0_10] : memref<1x16x512xf32, #tpu.memory_space<vmem>>, vector<1x16x512xf32>
    %11 = vector.shape_cast %10 : vector<1x16x512xf32> to vector<16x512xf32>
    %12 = vector.shape_cast %9 : vector<16x512xf32> to vector<1x16x512xf32>
    tpu.vector_store %arg5[%c0_8, %c0_9, %c0_10], %12 {strides = array<i32>} : memref<1x16x512xf32, #tpu.memory_space<vmem>>, vector<1x16x512xf32>,
    return
  }
  func.func @transform_0(%arg0: i32, %arg1: i32) -> (i32, i32, i32) {
    %c0_i32 = arith.constant 0 : i32
    %c0_i32_0 = arith.constant 0 : i32
    return %arg0, %arg1, %c0_i32 : i32, i32, i32
  }
  func.func @transform_1(%arg0: i32, %arg1: i32) -> (i32, i32, i32) {
    %c0_i32 = arith.constant 0 : i32
    %c0_i32_0 = arith.constant 0 : i32
    %c0_i32_1 = arith.constant 0 : i32
    return %arg0, %c0_i32, %c0_i32_0 : i32, i32, i32
  }
  func.func @transform_2(%arg0: i32, %arg1: i32) -> (i32, i32, i32) {
    %c0_i32 = arith.constant 0 : i32
    %c0_i32_0 = arith.constant 0 : i32
    %c0_i32_1 = arith.constant 0 : i32
    %c0_i32_2 = arith.constant 0 : i32
    return %c0_i32, %c0_i32_0, %c0_i32_1 : i32, i32, i32
  }
  func.func @transform_3(%arg0: i32, %arg1: i32) -> (i32, i32, i32) {
    %c0_i32 = arith.constant 0 : i32
    %c0_i32_0 = arith.constant 0 : i32
    return %arg0, %arg1, %c0_i32 : i32, i32, i32
  }
}

</mosaic_0001>

<llo_original>
// kernel: grn_forward.2
$region0: #{grn_forward.2}
  #allocation0 [shape = 'u32[]', space=smem, size = 0x4, offset = 0x4, fixed_abs, tag = 'smem constant byte address 0x4 - core index']
  #allocation1 [shape = 'u32[144,128]{1,0:T(1,128)}', space=vmem, size = 0x12000, scoped, tag = 'internal scratch']
  %s0 = inlined_call_operand.vmem [shape: f32[2,16,512], index: 0, kind: input, shape index: {}]
  %s1 = inlined_call_operand.vmem [shape: f32[2,1,512], index: 1, kind: output, shape index: {}]
  %s2 = sld [smem:[#allocation0]]
  $region41: #{grn_forward.2} parent=0
    _
  %s4 = ssub.s32 1, %s2
  %s5 = scalar_select 0, %s4, %s2
  loop: start=0, step=1, limit=4
  $region2: #{grn_forward.2} parent=0 // loop_pre_header
    _
  $region3: #{grn_forward.2} parent=0 // loop_header
    %s7 = sphi 0, %s11
    %p8 = scmp.ge.s32.totalorder %s7, 4
    %s14 = sphi 0, %s26
    %s15 = sphi 0, %s22
    %s16 = sphi 0, %s14
    %s17 = sphi 0, %s15
    %s18 = sphi 0, %s16
    %s19 = sphi 0, %s17
    %s31 = sphi 0, %s33
    %s34 = sphi 0, %s31
    %s35 = sphi 0, %s34
    %s51 = sphi 0, %s35
    %s57 = sphi 0, %s59
    %s60 = sphi 0, %s57
    %s61 = sphi 0, %s60
    %s77 = sphi 0, %s61
  $region4: #{grn_forward.2} parent=0 // loop_header_branch
    %10 = sbr.rel (%p8) target = $region8
  $region5: #{grn_forward.2} parent=0 // loop_body
    %s12 = ssub.s32 %s7, 1
    %s13 = ssub.s32 %s7, 2
    %s20 = sadd.s32 1, %s15
    %p21 = scmp.ge.s32.totalorder %s20, 1
    %s22 = scalar_select %p21, 0, %s20
    %s23 = sadd.s32 1, %s14
    %s24 = scalar_select %p21, %s23, %s14
    %p25 = scmp.ge.s32.totalorder %s24, 2
    %s26 = scalar_select %p25, 0, %s24
    %s27 = ssub.s32 %s14, %s26
    %s28 = ssub.s32 %s15, %s22
    %s29 = sor.u32 %s27, %s28
    %p30 = scmp.eq.s32.totalorder %s29, 0
    %s32 = sadd.s32 %s31, 1
    %s33 = scalar_select %p30, %s31, %s32
    %p36 = pneg %p30
    %p37 = scmp.eq.s32.totalorder %s7, 1
    %p38 = por %p36, %p37
    %p39 = scmp.ne.s32.totalorder %s31, %s34
    %p40 = scmp.eq.s32.totalorder %s7, 0
    %p41 = por %p39, %p40
    %p42 = scmp.ne.s32.totalorder %s31, %s34
    %p43 = scmp.eq.s32.totalorder %s12, 1
    %p44 = por %p42, %p43
    %p45 = scmp.ne.s32.totalorder %s34, %s35
    %p46 = scmp.eq.s32.totalorder %s12, 0
    %p47 = por %p45, %p46
    %p48 = scmp.ne.s32.totalorder %s34, %s35
    %p49 = scmp.eq.s32.totalorder %s13, 1
    %p50 = por %p48, %p49
    %p52 = scmp.ne.s32.totalorder %s35, %s51
    %p53 = scmp.eq.s32.totalorder %s13, 0
    %p54 = por %p52, %p53
    %s55 = ssub.s32 %s14, %s26
    %p56 = scmp.eq.s32.totalorder %s55, 0
    %s58 = sadd.s32 %s57, 1
    %s59 = scalar_select %p56, %s57, %s58
    %p62 = pneg %p56
    %p63 = scmp.eq.s32.totalorder %s7, 1
    %p64 = por %p62, %p63
    %p65 = scmp.ne.s32.totalorder %s57, %s60
    %p66 = scmp.eq.s32.totalorder %s7, 0
    %p67 = por %p65, %p66
    %p68 = scmp.ne.s32.totalorder %s57, %s60
    %p69 = scmp.eq.s32.totalorder %s12, 1
    %p70 = por %p68, %p69
    %p71 = scmp.ne.s32.totalorder %s60, %s61
    %p72 = scmp.eq.s32.totalorder %s12, 0
    %p73 = por %p71, %p72
    %p74 = scmp.ne.s32.totalorder %s60, %s61
    %p75 = scmp.eq.s32.totalorder %s13, 1
    %p76 = por %p74, %p75
    %p78 = scmp.ne.s32.totalorder %s61, %s77
    %p79 = scmp.eq.s32.totalorder %s13, 0
    %p80 = por %p78, %p79
    %p81 = scmp.le.s32.totalorder 1, %s7
    %p82 = scmp.lt.s32.totalorder %s7, 3
    %p83 = pnand %p81, %p82
    %p84 = pneg %p83
    // Predicated region
    $region9: #{grn_forward.2} parent=5 // pred_check
      _
    $region10: #{grn_forward.2} parent=5 // pred_check_branch
      %86 = sbr.rel (%p83) target = $region12
    $region11: #{grn_forward.2} parent=5 // pred_region
      %s87 = ssub.s32 %s7, 1
    $region12: #{grn_forward.2} parent=5 // pred_fallthru
      _
    %p88 = scmp.lt.s32.totalorder %s7, 2
    // Predicated region
    $region13: #{grn_forward.2} parent=5 // pred_check
      %p89 = pneg %p88
    $region14: #{grn_forward.2} parent=5 // pred_check_branch
      %91 = sbr.rel (%p89) target = $region16
    $region15: #{grn_forward.2} parent=5 // pred_region
      // Predicated region
      $region17: #{grn_forward.2} parent=15 // pred_check
        %p92 = pneg %p41
      $region18: #{grn_forward.2} parent=15 // pred_check_branch
        %94 = sbr.rel (%p92) target = $region20
      $region19: #{grn_forward.2} parent=15 // pred_region
        %s95 = smul.u32 2, %s15
        %p96 = scmp.lt.s32.totalorder %s14, 1
        %s97 = scalar_select %p96, %s14, 1
        %p98 = scmp.lt.s32.totalorder %s95, 1
        %s99 = scalar_select %p98, %s95, 1
        %s100 = smul.addr %s99, 4
        %s101 = smul.addr %s97, 8
        %s102 = sadd.s32 %s100, %s101
        %s103 = smul.addr %s102, 8
        %s104 = scalar_lea.vmem %s0, %s103
        %s105 = smul.u32 2, %s15
      $region20: #{grn_forward.2} parent=15 // pred_fallthru
        _
    $region16: #{grn_forward.2} parent=5 // pred_fallthru
      _
    %p106 = scmp.le.s32.totalorder 1, %s7
    %p107 = scmp.lt.s32.totalorder %s7, 3
    %p108 = pnand %p106, %p107
    %p109 = pneg %p108
    // Predicated region
    $region21: #{grn_forward.2} parent=5 // pred_check
      _
    $region22: #{grn_forward.2} parent=5 // pred_check_branch
      %111 = sbr.rel (%p108) target = $region24
    $region23: #{grn_forward.2} parent=5 // pred_region
      %s112 = ssub.s32 %s7, 1
      %s113 = smul.u32 2, %s17
      %p114 = scmp.lt.s32.totalorder %s16, 1
      %s115 = scalar_select %p114, %s16, 1
      %p116 = scmp.lt.s32.totalorder %s113, 1
      %s117 = scalar_select %p116, %s113, 1
      %s118 = smul.addr %s117, 4
      %s119 = smul.addr %s115, 8
      %s120 = sadd.s32 %s118, %s119
      %s121 = smul.addr %s120, 8
      %s122 = scalar_lea.vmem %s0, %s121
      %p123 = pneg %p47
      %p124 = pneg %p44
      %p125 = pneg %p73
      %p126 = pneg %p70
      %p127 = scmp.lt.s32.totalorder %s16, 1
      %s128 = scalar_select %p127, %s16, 1
      %s129 = smul.addr %s128, 4
      %s130 = scalar_lea.vmem %s1, %s129
      %s131 = smul.u32 2, %s17
      %p132 = scmp.lt.s32.totalorder %s16, 1
      %s133 = scalar_select %p132, %s16, 1
      %p134 = scmp.lt.s32.totalorder %s131, 1
      %s135 = scalar_select %p134, %s131, 1
      %s136 = smul.addr %s135, 4
      %s137 = smul.addr %s133, 8
      %s138 = sadd.s32 %s136, %s137
      %s139 = smul.addr %s138, 8
      %s140 = scalar_lea.vmem %s0, %s139
      %s141 = smul.u32 2, %s17
      %p142 = scmp.lt.s32.totalorder %s16, 1
      %s143 = scalar_select %p142, %s16, 1
      %s144 = smul.addr %s143, 4
      %s145 = scalar_lea.vmem %s1, %s144
      %p146 = scmp.eq.s32.totalorder %s17, 0
      // Predicated region
      $region25: #{grn_forward.2} parent=23 // pred_check
        %p147 = pneg %p146
      $region26: #{grn_forward.2} parent=23 // pred_check_branch
        %149 = sbr.rel (%p147) target = $region28
      $region27: #{grn_forward.2} parent=23 // pred_region
        %v150 = vlaneseq
        %vm151 = vcmp.ge.s32.totalorder %v150, 0
        %vm152 = vcmp.lt.s32.totalorder %v150, 512
        %vm153 = vmand %vm151, %vm152
        %154 = vst.msk [vmem:[%s145] sm:$0xf] %vm153, 0.0
      $region28: #{grn_forward.2} parent=23 // pred_fallthru
        _
      %v155 = vld [vmem:[%s140] sm:$0xff]
      %v156 = vld [vmem:[%s140 + $0x8] sm:$0xff]
      %v157 = vld [vmem:[%s140 + $0x10] sm:$0xff]
      %v158 = vld [vmem:[%s140 + $0x18] sm:$0xff]
      %v159 = vld [vmem:[%s140 + $0x20] sm:$0xff]
      %v160 = vld [vmem:[%s140 + $0x28] sm:$0xff]
      %v161 = vld [vmem:[%s140 + $0x30] sm:$0xff]
      %v162 = vld [vmem:[%s140 + $0x38] sm:$0xff]
      %v163 = vld [vmem:[%s145] sm:$0xf]
      %v164 = vmul.f32 %v155, %v155
      %v165 = vmul.f32 %v156, %v156
      %v166 = vmul.f32 %v157, %v157
      %v167 = vmul.f32 %v158, %v158
      %v168 = vmul.f32 %v159, %v159
      %v169 = vmul.f32 %v160, %v160
      %v170 = vmul.f32 %v161, %v161
      %v171 = vmul.f32 %v162, %v162
      %v172 = vadd.f32 %v164, %v168
      %v173 = vrot.slane %v172, 4
      %v174 = vadd.f32 %v172, %v173
      %v175 = vrot.slane %v174, 2
      %v176 = vadd.f32 %v174, %v175
      %v177 = vrot.slane %v176, 1
      %v178 = vadd.f32 %v176, %v177
      %v179 = vadd.f32 %v165, %v169
      %v180 = vrot.slane %v179, 4
      %v181 = vadd.f32 %v179, %v180
      %v182 = vrot.slane %v181, 2
      %v183 = vadd.f32 %v181, %v182
      %v184 = vrot.slane %v183, 1
      %v185 = vadd.f32 %v183, %v184
      %v186 = vadd.f32 %v166, %v170
      %v187 = vrot.slane %v186, 4
      %v188 = vadd.f32 %v186, %v187
      %v189 = vrot.slane %v188, 2
      %v190 = vadd.f32 %v188, %v189
      %v191 = vrot.slane %v190, 1
      %v192 = vadd.f32 %v190, %v191
      %v193 = vadd.f32 %v167, %v171
      %v194 = vrot.slane %v193, 4
      %v195 = vadd.f32 %v193, %v194
      %v196 = vrot.slane %v195, 2
      %v197 = vadd.f32 %v195, %v196
      %v198 = vrot.slane %v197, 1
      %v199 = vadd.f32 %v197, %v198
      %v204 = vcombine.low %v178, %v185
      %v205 = vcombine.low %v192, %v199
      %v207 = vunpack.c.l.s4 1966171168
      %v208 = vunpack.c.0.s8 %v207
      %v209 = vlaneseq
      %v210 = vshrl.u32 %v209, 7
      %v211 = vsub.s32 %v208, %v210
      %v212 = vrot.slane %v204, %v211
      %v214 = vunpack.c.l.s4 1966171168
      %v215 = vunpack.c.0.s8 %v214
      %v216 = vlaneseq
      %v217 = vshrl.u32 %v216, 7
      %v218 = vsub.s32 %v215, %v217
      %v219 = vrot.slane %v205, %v218
      %v220 = vcombine.low %v212, %v219
      %v222 = vunpack.c.l.s4 1966171168
      %v223 = vunpack.c.0.s8 %v222
      %v224 = vlaneseq
      %v225 = vshrl.u32 %v224, 7
      %v226 = vsub.s32 %v223, %v225
      %v227 = vrot.slane %v220, %v226
      %v229 = vadd.f32 %v163, %v227
      %v230 = vlaneseq
      %vm231 = vcmp.ge.s32.totalorder %v230, 0
      %vm232 = vcmp.lt.s32.totalorder %v230, 512
      %vm233 = vmand %vm231, %vm232
      %234 = vst.msk [vmem:[%s145] sm:$0xf] %vm233, %v229
      %p235 = scmp.lt.s32.totalorder %s16, 1
      %s236 = scalar_select %p235, %s16, 1
      %s237 = smul.addr %s236, 4
      %s238 = scalar_lea.vmem %s1, %s237
      // Predicated region
      $region29: #{grn_forward.2} parent=23 // pred_check
        %p239 = pneg %p70
      $region30: #{grn_forward.2} parent=23 // pred_check_branch
        %241 = sbr.rel (%p239) target = $region32
      $region31: #{grn_forward.2} parent=23 // pred_region
        _
      $region32: #{grn_forward.2} parent=23 // pred_fallthru
        _
    $region24: #{grn_forward.2} parent=5 // pred_fallthru
      _
    %p242 = scmp.le.s32.totalorder 2, %s7
    // Predicated region
    $region33: #{grn_forward.2} parent=5 // pred_check
      %p243 = pneg %p242
    $region34: #{grn_forward.2} parent=5 // pred_check_branch
      %245 = sbr.rel (%p243) target = $region36
    $region35: #{grn_forward.2} parent=5 // pred_region
      %s246 = ssub.s32 %s7, 2
      // Predicated region
      $region37: #{grn_forward.2} parent=35 // pred_check
        %p247 = pneg %p76
      $region38: #{grn_forward.2} parent=35 // pred_check_branch
        %249 = sbr.rel (%p247) target = $region40
      $region39: #{grn_forward.2} parent=35 // pred_region
        %p250 = scmp.lt.s32.totalorder %s18, 1
        %s251 = scalar_select %p250, %s18, 1
        %s252 = smul.addr %s251, 4
        %s253 = scalar_lea.vmem %s1, %s252
      $region40: #{grn_forward.2} parent=35 // pred_fallthru
        _
    $region36: #{grn_forward.2} parent=5 // pred_fallthru
      _
  $region6: #{grn_forward.2} parent=0 // loop_footer
    %s11 = sadd.s32 1, %s7
  $region7: #{grn_forward.2} parent=0 // loop_footer_branch
    %6 = sbr.rel target = $region3
  $region8: #{grn_forward.2} parent=0 // loop_exit
    _

// kernel: grn_forward.3
$region0: #{grn_forward.3}
  #allocation0 [shape = 'u32[]', space=smem, size = 0x4, offset = 0x4, fixed_abs, tag = 'smem constant byte address 0x4 - core index']
  #allocation1 [shape = 'u32[144,128]{1,0:T(1,128)}', space=vmem, size = 0x12000, scoped, tag = 'internal scratch']
  %s0 = inlined_call_operand.vmem [shape: f32[2,16,512], index: 0, kind: input, shape index: {}]
  %s1 = inlined_call_operand.vmem [shape: f32[2,1,512], index: 1, kind: input, shape index: {}]
  %s2 = inlined_call_operand.vmem [shape: f32[1,1,512], index: 2, kind: input, shape index: {}]
  %s3 = inlined_call_operand.vmem [shape: f32[2,16,512], index: 3, kind: output, shape index: {}]
  %s4 = sld [smem:[#allocation0]]
  $region45: #{grn_forward.3} parent=0
    _
  %s6 = ssub.s32 1, %s4
  %s7 = scalar_select 0, %s6, %s4
  loop: start=0, step=1, limit=4
  $region2: #{grn_forward.3} parent=0 // loop_pre_header
    _
  $region3: #{grn_forward.3} parent=0 // loop_header
    %s9 = sphi 0, %s13
    %p10 = scmp.ge.s32.totalorder %s9, 4
    %s16 = sphi 0, %s28
    %s17 = sphi 0, %s24
    %s18 = sphi 0, %s16
    %s19 = sphi 0, %s17
    %s20 = sphi 0, %s18
    %s21 = sphi 0, %s19
    %s33 = sphi 0, %s35
    %s36 = sphi 0, %s33
    %s37 = sphi 0, %s36
    %s53 = sphi 0, %s37
    %s59 = sphi 0, %s61
    %s62 = sphi 0, %s59
    %s63 = sphi 0, %s62
    %s79 = sphi 0, %s63
    %s83 = sphi 0, %s83
    %s85 = sphi 0, %s83
    %s86 = sphi 0, %s85
    %s100 = sphi 0, %s86
    %s108 = sphi 0, %s110
    %s111 = sphi 0, %s108
    %s112 = sphi 0, %s111
    %s128 = sphi 0, %s112
  $region4: #{grn_forward.3} parent=0 // loop_header_branch
    %12 = sbr.rel (%p10) target = $region8
  $region5: #{grn_forward.3} parent=0 // loop_body
    %s14 = ssub.s32 %s9, 1
    %s15 = ssub.s32 %s9, 2
    %s22 = sadd.s32 1, %s17
    %p23 = scmp.ge.s32.totalorder %s22, 1
    %s24 = scalar_select %p23, 0, %s22
    %s25 = sadd.s32 1, %s16
    %s26 = scalar_select %p23, %s25, %s16
    %p27 = scmp.ge.s32.totalorder %s26, 2
    %s28 = scalar_select %p27, 0, %s26
    %s29 = ssub.s32 %s16, %s28
    %s30 = ssub.s32 %s17, %s24
    %s31 = sor.u32 %s29, %s30
    %p32 = scmp.eq.s32.totalorder %s31, 0
    %s34 = sadd.s32 %s33, 1
    %s35 = scalar_select %p32, %s33, %s34
    %p38 = pneg %p32
    %p39 = scmp.eq.s32.totalorder %s9, 1
    %p40 = por %p38, %p39
    %p41 = scmp.ne.s32.totalorder %s33, %s36
    %p42 = scmp.eq.s32.totalorder %s9, 0
    %p43 = por %p41, %p42
    %p44 = scmp.ne.s32.totalorder %s33, %s36
    %p45 = scmp.eq.s32.totalorder %s14, 1
    %p46 = por %p44, %p45
    %p47 = scmp.ne.s32.totalorder %s36, %s37
    %p48 = scmp.eq.s32.totalorder %s14, 0
    %p49 = por %p47, %p48
    %p50 = scmp.ne.s32.totalorder %s36, %s37
    %p51 = scmp.eq.s32.totalorder %s15, 1
    %p52 = por %p50, %p51
    %p54 = scmp.ne.s32.totalorder %s37, %s53
    %p55 = scmp.eq.s32.totalorder %s15, 0
    %p56 = por %p54, %p55
    %s57 = ssub.s32 %s16, %s28
    %p58 = scmp.eq.s32.totalorder %s57, 0
    %s60 = sadd.s32 %s59, 1
    %s61 = scalar_select %p58, %s59, %s60
    %p64 = pneg %p58
    %p65 = scmp.eq.s32.totalorder %s9, 1
    %p66 = por %p64, %p65
    %p67 = scmp.ne.s32.totalorder %s59, %s62
    %p68 = scmp.eq.s32.totalorder %s9, 0
    %p69 = por %p67, %p68
    %p70 = scmp.ne.s32.totalorder %s59, %s62
    %p71 = scmp.eq.s32.totalorder %s14, 1
    %p72 = por %p70, %p71
    %p73 = scmp.ne.s32.totalorder %s62, %s63
    %p74 = scmp.eq.s32.totalorder %s14, 0
    %p75 = por %p73, %p74
    %p76 = scmp.ne.s32.totalorder %s62, %s63
    %p77 = scmp.eq.s32.totalorder %s15, 1
    %p78 = por %p76, %p77
    %p80 = scmp.ne.s32.totalorder %s63, %s79
    %p81 = scmp.eq.s32.totalorder %s15, 0
    %p82 = por %p80, %p81
    %s84 = sadd.s32 %s83, 1
    %p87 = scmp.eq.s32.totalorder %s9, 1
    %p88 = scmp.ne.s32.totalorder %s83, %s85
    %p89 = scmp.eq.s32.totalorder %s9, 0
    %p90 = por %p88, %p89
    %p91 = scmp.ne.s32.totalorder %s83, %s85
    %p92 = scmp.eq.s32.totalorder %s14, 1
    %p93 = por %p91, %p92
    %p94 = scmp.ne.s32.totalorder %s85, %s86
    %p95 = scmp.eq.s32.totalorder %s14, 0
    %p96 = por %p94, %p95
    %p97 = scmp.ne.s32.totalorder %s85, %s86
    %p98 = scmp.eq.s32.totalorder %s15, 1
    %p99 = por %p97, %p98
    %p101 = scmp.ne.s32.totalorder %s86, %s100
    %p102 = scmp.eq.s32.totalorder %s15, 0
    %p103 = por %p101, %p102
    %s104 = ssub.s32 %s16, %s28
    %s105 = ssub.s32 %s17, %s24
    %s106 = sor.u32 %s104, %s105
    %p107 = scmp.eq.s32.totalorder %s106, 0
    %s109 = sadd.s32 %s108, 1
    %s110 = scalar_select %p107, %s108, %s109
    %p113 = pneg %p107
    %p114 = scmp.eq.s32.totalorder %s9, 1
    %p115 = por %p113, %p114
    %p116 = scmp.ne.s32.totalorder %s108, %s111
    %p117 = scmp.eq.s32.totalorder %s9, 0
    %p118 = por %p116, %p117
    %p119 = scmp.ne.s32.totalorder %s108, %s111
    %p120 = scmp.eq.s32.totalorder %s14, 1
    %p121 = por %p119, %p120
    %p122 = scmp.ne.s32.totalorder %s111, %s112
    %p123 = scmp.eq.s32.totalorder %s14, 0
    %p124 = por %p122, %p123
    %p125 = scmp.ne.s32.totalorder %s111, %s112
    %p126 = scmp.eq.s32.totalorder %s15, 1
    %p127 = por %p125, %p126
    %p129 = scmp.ne.s32.totalorder %s112, %s128
    %p130 = scmp.eq.s32.totalorder %s15, 0
    %p131 = por %p129, %p130
    %p132 = scmp.le.s32.totalorder 1, %s9
    %p133 = scmp.lt.s32.totalorder %s9, 3
    %p134 = pnand %p132, %p133
    %p135 = pneg %p134
    // Predicated region
    $region9: #{grn_forward.3} parent=5 // pred_check
      _
    $region10: #{grn_forward.3} parent=5 // pred_check_branch
      %137 = sbr.rel (%p134) target = $region12
    $region11: #{grn_forward.3} parent=5 // pred_region
      %s138 = ssub.s32 %s9, 1
      // Predicated region
      $region13: #{grn_forward.3} parent=11 // pred_check
        %p139 = pneg %p96
      $region14: #{grn_forward.3} parent=11 // pred_check_branch
        %141 = sbr.rel (%p139) target = $region16
      $region15: #{grn_forward.3} parent=11 // pred_region
        _
      $region16: #{grn_forward.3} parent=11 // pred_fallthru
        _
    $region12: #{grn_forward.3} parent=5 // pred_fallthru
      _
    %p142 = scmp.lt.s32.totalorder %s9, 2
    // Predicated region
    $region17: #{grn_forward.3} parent=5 // pred_check
      %p143 = pneg %p142
    $region18: #{grn_forward.3} parent=5 // pred_check_branch
      %145 = sbr.rel (%p143) target = $region20
    $region19: #{grn_forward.3} parent=5 // pred_region
      // Predicated region
      $region21: #{grn_forward.3} parent=19 // pred_check
        %p146 = pneg %p43
      $region22: #{grn_forward.3} parent=19 // pred_check_branch
        %148 = sbr.rel (%p146) target = $region24
      $region23: #{grn_forward.3} parent=19 // pred_region
        %s149 = smul.u32 2, %s17
        %p150 = scmp.lt.s32.totalorder %s16, 1
        %s151 = scalar_select %p150, %s16, 1
        %p152 = scmp.lt.s32.totalorder %s149, 1
        %s153 = scalar_select %p152, %s149, 1
        %s154 = smul.addr %s153, 4
        %s155 = smul.addr %s151, 8
        %s156 = sadd.s32 %s154, %s155
        %s157 = smul.addr %s156, 8
        %s158 = scalar_lea.vmem %s0, %s157
        %s159 = smul.u32 2, %s17
      $region24: #{grn_forward.3} parent=19 // pred_fallthru
        _
      // Predicated region
      $region25: #{grn_forward.3} parent=19 // pred_check
        %p160 = pneg %p69
      $region26: #{grn_forward.3} parent=19 // pred_check_branch
        %162 = sbr.rel (%p160) target = $region28
      $region27: #{grn_forward.3} parent=19 // pred_region
        %p163 = scmp.lt.s32.totalorder %s16, 1
        %s164 = scalar_select %p163, %s16, 1
        %s165 = smul.addr %s164, 4
        %s166 = scalar_lea.vmem %s1, %s165
      $region28: #{grn_forward.3} parent=19 // pred_fallthru
        _
    $region20: #{grn_forward.3} parent=5 // pred_fallthru
      _
    %p167 = scmp.le.s32.totalorder 1, %s9
    %p168 = scmp.lt.s32.totalorder %s9, 3
    %p169 = pnand %p167, %p168
    %p170 = pneg %p169
    // Predicated region
    $region29: #{grn_forward.3} parent=5 // pred_check
      _
    $region30: #{grn_forward.3} parent=5 // pred_check_branch
      %172 = sbr.rel (%p169) target = $region32
    $region31: #{grn_forward.3} parent=5 // pred_region
      %s173 = ssub.s32 %s9, 1
      %s174 = smul.u32 2, %s19
      %p175 = scmp.lt.s32.totalorder %s18, 1
      %s176 = scalar_select %p175, %s18, 1
      %p177 = scmp.lt.s32.totalorder %s174, 1
      %s178 = scalar_select %p177, %s174, 1
      %s179 = smul.addr %s178, 4
      %s180 = smul.addr %s176, 8
      %s181 = sadd.s32 %s179, %s180
      %s182 = smul.addr %s181, 8
      %s183 = scalar_lea.vmem %s0, %s182
      %p184 = pneg %p49
      %p185 = pneg %p46
      %p186 = scmp.lt.s32.totalorder %s18, 1
      %s187 = scalar_select %p186, %s18, 1
      %s188 = smul.addr %s187, 4
      %s189 = scalar_lea.vmem %s1, %s188
      %p190 = pneg %p75
      %p191 = pneg %p72
      %p192 = pneg %p96
      %p193 = pneg %p93
      %p194 = pneg %p124
      %p195 = pneg %p121
      %s196 = smul.u32 2, %s19
      %p197 = scmp.lt.s32.totalorder %s18, 1
      %s198 = scalar_select %p197, %s18, 1
      %p199 = scmp.lt.s32.totalorder %s196, 1
      %s200 = scalar_select %p199, %s196, 1
      %s201 = smul.addr %s200, 4
      %s202 = smul.addr %s198, 8
      %s203 = sadd.s32 %s201, %s202
      %s204 = smul.addr %s203, 8
      %s205 = scalar_lea.vmem %s3, %s204
      %s206 = smul.u32 2, %s19
      %p207 = scmp.lt.s32.totalorder %s18, 1
      %s208 = scalar_select %p207, %s18, 1
      %p209 = scmp.lt.s32.totalorder %s206, 1
      %s210 = scalar_select %p209, %s206, 1
      %s211 = smul.addr %s210, 4
      %s212 = smul.addr %s208, 8
      %s213 = sadd.s32 %s211, %s212
      %s214 = smul.addr %s213, 8
      %s215 = scalar_lea.vmem %s0, %s214
      %s216 = smul.u32 2, %s19
      %p217 = scmp.lt.s32.totalorder %s18, 1
      %s218 = scalar_select %p217, %s18, 1
      %s219 = smul.addr %s218, 4
      %s220 = scalar_lea.vmem %s1, %s219
      %s221 = smul.u32 2, %s19
      %p222 = scmp.lt.s32.totalorder %s18, 1
      %s223 = scalar_select %p222, %s18, 1
      %p224 = scmp.lt.s32.totalorder %s221, 1
      %s225 = scalar_select %p224, %s221, 1
      %s226 = smul.addr %s225, 4
      %s227 = smul.addr %s223, 8
      %s228 = sadd.s32 %s226, %s227
      %s229 = smul.addr %s228, 8
      %s230 = scalar_lea.vmem %s3, %s229
      %s231 = smul.u32 2, %s19
      %v232 = vld [vmem:[%s215] sm:$0xff]
      %v233 = vld [vmem:[%s215 + $0x8] sm:$0xff]
      %v234 = vld [vmem:[%s215 + $0x10] sm:$0xff]
      %v235 = vld [vmem:[%s215 + $0x18] sm:$0xff]
      %v236 = vld [vmem:[%s215 + $0x20] sm:$0xff]
      %v237 = vld [vmem:[%s215 + $0x28] sm:$0xff]
      %v238 = vld [vmem:[%s215 + $0x30] sm:$0xff]
      %v239 = vld [vmem:[%s215 + $0x38] sm:$0xff]
      %v240 = vld [vmem:[%s220] sm:$0xf]
      %v242 = vlaneseq
      %v243 = vshrl.u32 %v242, 7
      %v244 = vsub.s32 0, %v243
      %v245 = vrot.slane %v240, %v244
      %v246 = vlaneseq
      %v247 = vshrl.u32 %v246, 7
      %v248 = vsub.s32 1, %v247
      %v249 = vrot.slane %v240, %v248
      %v250 = vlaneseq
      %v251 = vshrl.u32 %v250, 7
      %v252 = vsub.s32 2, %v251
      %v253 = vrot.slane %v240, %v252
      %v254 = vlaneseq
      %v255 = vshrl.u32 %v254, 7
      %v256 = vsub.s32 3, %v255
      %v257 = vrot.slane %v240, %v256
      %v262 = vmul.f32 %v232, %v245
      %v263 = vmul.f32 %v233, %v249
      %v264 = vmul.f32 %v234, %v253
      %v265 = vmul.f32 %v235, %v257
      %v266 = vmul.f32 %v236, %v245
      %v267 = vmul.f32 %v237, %v249
      %v268 = vmul.f32 %v238, %v253
      %v269 = vmul.f32 %v239, %v257
      %v270 = vld [vmem:[%s2] sm:$0xf]
      %v272 = vlaneseq
      %v273 = vshrl.u32 %v272, 7
      %v274 = vsub.s32 0, %v273
      %v275 = vrot.slane %v270, %v274
      %v276 = vlaneseq
      %v277 = vshrl.u32 %v276, 7
      %v278 = vsub.s32 1, %v277
      %v279 = vrot.slane %v270, %v278
      %v280 = vlaneseq
      %v281 = vshrl.u32 %v280, 7
      %v282 = vsub.s32 2, %v281
      %v283 = vrot.slane %v270, %v282
      %v284 = vlaneseq
      %v285 = vshrl.u32 %v284, 7
      %v286 = vsub.s32 3, %v285
      %v287 = vrot.slane %v270, %v286
      %v292 = vadd.f32 %v262, %v275
      %v293 = vadd.f32 %v263, %v279
      %v294 = vadd.f32 %v264, %v283
      %v295 = vadd.f32 %v265, %v287
      %v296 = vadd.f32 %v266, %v275
      %v297 = vadd.f32 %v267, %v279
      %v298 = vadd.f32 %v268, %v283
      %v299 = vadd.f32 %v269, %v287
      %300 = vst [vmem:[%s230] sm:$0xff] %v292
      %301 = vst [vmem:[%s230 + $0x8] sm:$0xff] %v293
      %302 = vst [vmem:[%s230 + $0x10] sm:$0xff] %v294
      %303 = vst [vmem:[%s230 + $0x18] sm:$0xff] %v295
      %304 = vst [vmem:[%s230 + $0x20] sm:$0xff] %v296
      %305 = vst [vmem:[%s230 + $0x28] sm:$0xff] %v297
      %306 = vst [vmem:[%s230 + $0x30] sm:$0xff] %v298
      %307 = vst [vmem:[%s230 + $0x38] sm:$0xff] %v299
      %s308 = smul.u32 2, %s19
      %p309 = scmp.lt.s32.totalorder %s18, 1
      %s310 = scalar_select %p309, %s18, 1
      %p311 = scmp.lt.s32.totalorder %s308, 1
      %s312 = scalar_select %p311, %s308, 1
      %s313 = smul.addr %s312, 4
      %s314 = smul.addr %s310, 8
      %s315 = sadd.s32 %s313, %s314
      %s316 = smul.addr %s315, 8
      %s317 = scalar_lea.vmem %s3, %s316
      // Predicated region
      $region33: #{grn_forward.3} parent=31 // pred_check
        %p318 = pneg %p121
      $region34: #{grn_forward.3} parent=31 // pred_check_branch
        %320 = sbr.rel (%p318) target = $region36
      $region35: #{grn_forward.3} parent=31 // pred_region
        %s321 = smul.u32 2, %s19
      $region36: #{grn_forward.3} parent=31 // pred_fallthru
        _
    $region32: #{grn_forward.3} parent=5 // pred_fallthru
      _
    %p322 = scmp.le.s32.totalorder 2, %s9
    // Predicated region
    $region37: #{grn_forward.3} parent=5 // pred_check
      %p323 = pneg %p322
    $region38: #{grn_forward.3} parent=5 // pred_check_branch
      %325 = sbr.rel (%p323) target = $region40
    $region39: #{grn_forward.3} parent=5 // pred_region
      %s326 = ssub.s32 %s9, 2
      // Predicated region
      $region41: #{grn_forward.3} parent=39 // pred_check
        %p327 = pneg %p127
      $region42: #{grn_forward.3} parent=39 // pred_check_branch
        %329 = sbr.rel (%p327) target = $region44
      $region43: #{grn_forward.3} parent=39 // pred_region
        %s330 = smul.u32 2, %s21
        %p331 = scmp.lt.s32.totalorder %s20, 1
        %s332 = scalar_select %p331, %s20, 1
        %p333 = scmp.lt.s32.totalorder %s330, 1
        %s334 = scalar_select %p333, %s330, 1
        %s335 = smul.addr %s334, 4
        %s336 = smul.addr %s332, 8
        %s337 = sadd.s32 %s335, %s336
        %s338 = smul.addr %s337, 8
        %s339 = scalar_lea.vmem %s3, %s338
      $region44: #{grn_forward.3} parent=39 // pred_fallthru
        _
    $region40: #{grn_forward.3} parent=5 // pred_fallthru
      _
  $region6: #{grn_forward.3} parent=0 // loop_footer
    %s13 = sadd.s32 1, %s9
  $region7: #{grn_forward.3} parent=0 // loop_footer_branch
    %8 = sbr.rel target = $region3
  $region8: #{grn_forward.3} parent=0 // loop_exit
    _

</llo_original>
